<compile_context>
chip_gen: v7x
topology: tpu7x:2x2x1
jax: 0.10.0
libtpu: 0.0.40
codegen_flags: <defaults>
</compile_context>

<pallas_src>
import functools

import jax
import jax.numpy as jnp
from jax.experimental import pallas as pl
from jax.experimental.pallas import tpu as pltpu


# ----------------------------------------------------------------------------
# Fused Pallas kernel: (conv1∘conv2 as one affine) -> LayerNorm -> Linear
# ----------------------------------------------------------------------------
def _tcn_fused_kernel(x_ref, g_ref, b_ref, wl_ref, bl_ref, o_ref):
    """One batch tile of the whole TCNEncoder forward.

    x_ref  : (TB, Cin*S)   flattened input tile (bf16)
    g_ref  : (Cin*S, D)    conv1∘conv2 folded dense matrix (bf16), D = C2*S
    b_ref  : (1, D)        folded conv bias (f32)
    wl_ref : (D, Np)       Linear weight with LayerNorm gamma folded in,
                           zero-padded to Np = lane-dense multiple of 128 (bf16)
    bl_ref : (1, Np)       Linear bias with LayerNorm beta folded in (f32)
    o_ref  : (TB, Np)      output tile (f32)
    """
    # --- both TemporalConvolutions as one MXU matmul (f32 accumulation) ---
    h = jnp.dot(x_ref[...], g_ref[...],
                preferred_element_type=jnp.float32) + b_ref[...]
    # h already has the PyTorch Flatten(1) layout: feature index = c*S + t.

    # --- LayerNorm statistics (gamma/beta folded into wl/bl; eps = 1e-5) ---
    mean = jnp.mean(h, axis=-1, keepdims=True)
    xc = h - mean
    var = jnp.mean(xc * xc, axis=-1, keepdims=True)
    y = xc * jax.lax.rsqrt(var + 1e-5)            # f32 VPU math (v5e-safe)

    # TODO(synk): Dropout1d(0.2) is stochastic; implemented as identity (eval mode).

    # --- Linear (gamma/beta already folded into wl/bl) ---
    o_ref[...] = jnp.dot(y.astype(wl_ref.dtype), wl_ref[...],
                         preferred_element_type=jnp.float32) + bl_ref[...]


# ----------------------------------------------------------------------------
# Wrapper helpers (pure layout/algebra plumbing, runs once under jit)
# ----------------------------------------------------------------------------
def _round_up(n, m):
    return ((n + m - 1) // m) * m


def _pick_block_b(batch, cap=512):
    """Large batch tile, but keep >= 2 grid steps on big batches (v7x megacore)."""
    tb = min(cap, _round_up(batch, 8))
    if batch >= 16:
        tb = min(tb, _round_up((batch + 1) // 2, 8))
    return max(8, tb)


def _conv_as_dense_matrix(w, n_samples, padding):
    """TemporalConvolution (stride=1, left 'replicate first sample' padding) as a
    dense matrix G so that  out_flat = x_flat @ G  with
      x_flat[b, c*S + s]   = x[b, c, s]
      out_flat[b, o*L + t] = conv(x)[b, o, t],   L = S - K + padding.
    """
    out_ch, in_ch, K = w.shape
    S = n_samples
    L = S - K + padding                                    # stride == 1
    t = jnp.arange(L)
    k = jnp.arange(K)
    # source sample index read by output position t, tap k; negative indices are
    # the causal pad, which replicates sample 0 -> clamp to 0.
    src = jnp.maximum(t[:, None] + k[None, :] - padding, 0)            # (L, K)
    onehot = (src[:, :, None] == jnp.arange(S)[None, None, :]).astype(w.dtype)
    g = jnp.einsum("ock,tks->csot", w, onehot)             # (Cin, S, Cout, L)
    return g.reshape(in_ch * S, out_ch * L)


def tcn_encoder_forward(x, params, lags, *, block_b=512,
                        compute_dtype=jnp.bfloat16):
    """x: (B, num_variables, num_samples) -> (B, out_dim)."""
    B, V, S = x.shape
    w1, b1 = params["w1"], params["b1"]
    w2, b2 = params["w2"], params["b2"]
    w_lin, b_lin = params["w_lin"], params["b_lin"]
    C1 = w1.shape[0]                      # num_classes * num_variables
    C2 = w2.shape[0]                      # num_classes
    K = lags
    L1 = S - K + K                        # == S (padding == kernel_size == lags)
    L2 = L1 - K + K                       # == S
    D = C2 * L2                           # LayerNorm / Linear feature dim
    out_dim = w_lin.shape[0]

    # ---- fold conv1∘conv2 (weights + causal padding + biases) in f32 ----
    g1 = _conv_as_dense_matrix(w1, S, K).astype(jnp.float32)        # (V*S,   C1*L1)
    g2 = _conv_as_dense_matrix(w2, L1, K).astype(jnp.float32)       # (C1*L1, C2*L2)
    g12 = (g1 @ g2).astype(compute_dtype)                           # (V*S, D)
    b1_row = jnp.repeat(b1.astype(jnp.float32), L1)[None, :]        # (1, C1*L1)
    b2_row = jnp.repeat(b2.astype(jnp.float32), L2)[None, :]        # (1, D)
    b12 = (b1_row @ g2 + b2_row).astype(jnp.float32)                # (1, D)
    # TODO(synk): for large S, g12 (O(S^2) bf16) must be tiled along its N dim
    # with a second grid axis to stay within v7x's 64 MiB VMEM.

    # ---- fold LayerNorm gamma/beta into the Linear; lane-dense pad columns ----
    gamma = params["gamma"].astype(jnp.float32)                     # (D,)
    beta = params["beta"].astype(jnp.float32)                       # (D,)
    wl_f32 = gamma[:, None] * w_lin.astype(jnp.float32).T           # (D, out_dim)
    bl_f32 = (beta @ w_lin.astype(jnp.float32).T
              + b_lin.astype(jnp.float32))[None, :]                 # (1, out_dim)
    n_pad = max(128, _round_up(out_dim, 128))                       # lane-dense store
    wl = jnp.zeros((D, n_pad), jnp.float32).at[:, :out_dim].set(wl_f32)
    wl = wl.astype(compute_dtype)
    bl = jnp.zeros((1, n_pad), jnp.float32).at[:, :out_dim].set(bl_f32)

    # ---- batch tiling: TB samples per grid step (pad B up to a multiple) ----
    tb = _pick_block_b(B, block_b)
    b_pad = _round_up(B, tb)
    x_flat = x.reshape(B, V * S).astype(compute_dtype)
    if b_pad != B:
        x_flat = jnp.pad(x_flat, ((0, b_pad - B), (0, 0)))

    def full(shape):                       # weights stay resident across the grid
        return pl.BlockSpec(shape, lambda i: (0, 0))

    out = pl.pallas_call(
        _tcn_fused_kernel,
        grid=(b_pad // tb,),
        in_specs=[
            pl.BlockSpec((tb, V * S), lambda i: (i, 0)),   # x tile (batch-blocked)
            full(g12.shape), full(b12.shape),
            full(wl.shape), full(bl.shape),
        ],
        out_specs=pl.BlockSpec((tb, n_pad), lambda i: (i, 0)),
        out_shape=jax.ShapeDtypeStruct((b_pad, n_pad), jnp.float32),
        compiler_params=pltpu.CompilerParams(
            dimension_semantics=("parallel",),   # shard batch over both v7x TCs
        ),
    )(x_flat, g12, b12, wl, bl)
    return out[:B, :out_dim]


# ----------------------------------------------------------------------------
# Pure-JAX reference (f32) for the correctness check
# ----------------------------------------------------------------------------
def _conv_ref(x, w, b, padding):
    B, Cin, S = x.shape
    Cout, _, K = w.shape
    nlength = S - K + padding
    xp = jnp.concatenate([jnp.repeat(x[:, :, :1], padding, axis=2), x], axis=2)
    idx = jnp.arange(nlength)[:, None] + jnp.arange(K)[None, :]
    win = xp[:, :, idx]                                    # (B, Cin, T, K)
    return jnp.einsum("bctk,ock->bot", win, w) + b[None, :, None]


def _ref_forward(x, p, lags):
    o1 = _conv_ref(x, p["w1"], p["b1"], lags)
    o2 = _conv_ref(o1, p["w2"], p["b2"], lags)
    f = o2.reshape(o2.shape[0], -1)
    mean = f.mean(-1, keepdims=True)
    var = ((f - mean) ** 2).mean(-1, keepdims=True)
    y = (f - mean) / jnp.sqrt(var + 1e-5) * p["gamma"] + p["beta"]
    return y @ p["w_lin"].T + p["b_lin"]


# ----------------------------------------------------------------------------
if __name__ == "__main__":
    # TCNEncoder(num_variables=4, num_classes=3, num_samples=16, out_dim=8, lags=5)
    B, V, C, S, out_dim, lags = 2, 4, 3, 16, 8, 5
    D = C * S

    key = jax.random.PRNGKey(0)
    k1, k2, k3, k4, k5, k6, k7, k8, kx = jax.random.split(key, 9)
    params = {
        # conv weights ~ randn (as in the module); non-zero biases to exercise them
        "w1": jax.random.normal(k1, (C * V, V, lags), jnp.float32),
        "b1": 0.1 * jax.random.normal(k4, (C * V,), jnp.float32),
        "w2": jax.random.normal(k2, (C, C * V, lags), jnp.float32),
        "b2": 0.1 * jax.random.normal(k5, (C,), jnp.float32),
        # LayerNorm affine
        "gamma": 1.0 + 0.1 * jax.random.normal(k6, (D,), jnp.float32),
        "beta": 0.1 * jax.random.normal(k7, (D,), jnp.float32),
        # Linear
        "w_lin": jax.random.normal(k3, (out_dim, D), jnp.float32) * 0.05,
        "b_lin": 0.1 * jax.random.normal(k8, (out_dim,), jnp.float32),
    }
    x = jax.random.normal(kx, (B, V, S), jnp.float32)

    fwd = jax.jit(functools.partial(tcn_encoder_forward, lags=lags))
    out = jax.block_until_ready(fwd(x, params))
    ref = jax.block_until_ready(_ref_forward(x, params, lags))

    assert out.shape == (B, out_dim), out.shape
    # Kernel uses bf16 MXU operands (f32 accumulation + f32 wrapper-side folds),
    # so compare against the f32 reference with a bf16-appropriate tolerance.
    max_err = float(jnp.max(jnp.abs(out - ref)))
    assert jnp.allclose(out, ref, atol=5e-2, rtol=5e-2), max_err
    print("KERNEL_OK")
</pallas_src>

<mosaic_0001>
module attributes {stable_mosaic.version = 11 : i64} {
  func.func @_tcn_fused_kernel(%arg0: i32, %arg1: memref<8x64xbf16, #tpu.memory_space<vmem>>, %arg2: memref<64x48xbf16, #tpu.memory_space<vmem>>, %arg3: memref<1x48xf32, #tpu.memory_space<vmem>>, %arg4: memref<48x128xbf16, #tpu.memory_space<vmem>>, %arg5: memref<1x128xf32, #tpu.memory_space<vmem>>, %arg6: memref<8x128xf32, #tpu.memory_space<vmem>>) attributes {dimension_semantics = [#tpu.dimension_semantics<parallel>], iteration_bounds = array<i64: 1>, scalar_prefetch = 0 : i64, scratch_operands = 0 : i64, tpu.core_type = #tpu.core_type<tc>, window_params = [{transform_indices = @transform_0, window_bounds = array<i64: 8, 64>}, {pipeline_mode = #tpu.pipeline_mode<synchronous>, transform_indices = @transform_1, window_bounds = array<i64: 64, 48>}, {pipeline_mode = #tpu.pipeline_mode<synchronous>, transform_indices = @transform_2, window_bounds = array<i64: 1, 48>}, {pipeline_mode = #tpu.pipeline_mode<synchronous>, transform_indices = @transform_3, window_bounds = array<i64: 48, 128>}, {pipeline_mode = #tpu.pipeline_mode<synchronous>, transform_indices = @transform_4, window_bounds = array<i64: 1, 128>}, {transform_indices = @transform_5, window_bounds = array<i64: 8, 128>}]} {
    %c0 = arith.constant 0 : index
    %c0_0 = arith.constant 0 : index
    %0 = vector.load %arg1[%c0, %c0_0] : memref<8x64xbf16, #tpu.memory_space<vmem>>, vector<8x64xbf16>
    %c0_1 = arith.constant 0 : index
    %c0_2 = arith.constant 0 : index
    %1 = vector.load %arg2[%c0_1, %c0_2] : memref<64x48xbf16, #tpu.memory_space<vmem>>, vector<64x48xbf16>
    %cst = arith.constant dense<0.000000e+00> : vector<8x48xf32>
    %2 = tpu.matmul %0, %1, %cst {dimension_numbers = #tpu.dot_dimension_numbers<[1], [0], [0], [1], [0, 0, 1, 1], [], []>} : vector<8x64xbf16>, vector<64x48xbf16>, vector<8x48xf32> -> vector<8x48xf32>
    %c0_3 = arith.constant 0 : index
    %c0_4 = arith.constant 0 : index
    %3 = vector.load %arg3[%c0_3, %c0_4] : memref<1x48xf32, #tpu.memory_space<vmem>>, vector<1x48xf32>
    %4 = vector.broadcast %3 : vector<1x48xf32> to vector<8x48xf32>
    %5 = arith.addf %2, %4 : vector<8x48xf32>
    %cst_5 = arith.constant dense<0.000000e+00> : vector<8xf32>
    %6 = vector.multi_reduction <add>, %5, %cst_5 [1] : vector<8x48xf32> to vector<8xf32>
    %7 = vector.shape_cast %6 : vector<8xf32> to vector<8x1xf32>
    %cst_6 = arith.constant 4.800000e+01 : f32
    %8 = vector.broadcast %cst_6 : f32 to vector<8x1xf32>
    %9 = arith.divf %7, %8 : vector<8x1xf32>
    %10 = vector.broadcast %9 : vector<8x1xf32> to vector<8x48xf32>
    %11 = arith.subf %5, %10 : vector<8x48xf32>
    %12 = arith.mulf %11, %11 : vector<8x48xf32>
    %cst_7 = arith.constant dense<0.000000e+00> : vector<8xf32>
    %13 = vector.multi_reduction <add>, %12, %cst_7 [1] : vector<8x48xf32> to vector<8xf32>
    %14 = vector.shape_cast %13 : vector<8xf32> to vector<8x1xf32>
    %cst_8 = arith.constant 4.800000e+01 : f32
    %15 = vector.broadcast %cst_8 : f32 to vector<8x1xf32>
    %16 = arith.divf %14, %15 : vector<8x1xf32>
    %cst_9 = arith.constant 9.99999974E-6 : f32
    %17 = vector.broadcast %cst_9 : f32 to vector<8x1xf32>
    %18 = arith.addf %16, %17 : vector<8x1xf32>
    %19 = math.rsqrt %18 : vector<8x1xf32>
    %20 = vector.broadcast %19 : vector<8x1xf32> to vector<8x48xf32>
    %21 = arith.mulf %11, %20 : vector<8x48xf32>
    %22 = arith.truncf %21 : vector<8x48xf32> to vector<8x48xbf16>
    %c0_10 = arith.constant 0 : index
    %c0_11 = arith.constant 0 : index
    %23 = vector.load %arg4[%c0_10, %c0_11] : memref<48x128xbf16, #tpu.memory_space<vmem>>, vector<48x128xbf16>
    %cst_12 = arith.constant dense<0.000000e+00> : vector<8x128xf32>
    %24 = tpu.matmul %22, %23, %cst_12 {dimension_numbers = #tpu.dot_dimension_numbers<[1], [0], [0], [1], [0, 0, 1, 1], [], []>} : vector<8x48xbf16>, vector<48x128xbf16>, vector<8x128xf32> -> vector<8x128xf32>
    %c0_13 = arith.constant 0 : index
    %c0_14 = arith.constant 0 : index
    %25 = vector.load %arg5[%c0_13, %c0_14] : memref<1x128xf32, #tpu.memory_space<vmem>>, vector<1x128xf32>
    %26 = vector.broadcast %25 : vector<1x128xf32> to vector<8x128xf32>
    %27 = arith.addf %24, %26 : vector<8x128xf32>
    %c0_15 = arith.constant 0 : index
    %c0_16 = arith.constant 0 : index
    %28 = vector.load %arg6[%c0_15, %c0_16] : memref<8x128xf32, #tpu.memory_space<vmem>>, vector<8x128xf32>
    tpu.vector_store %arg6[%c0_15, %c0_16], %27 {strides = array<i32>} : memref<8x128xf32, #tpu.memory_space<vmem>>, vector<8x128xf32>,
    return
  }
  func.func @transform_0(%arg0: i32) -> (i32, i32) {
    %c0_i32 = arith.constant 0 : i32
    %c0_i32_0 = arith.constant 0 : i32
    return %arg0, %c0_i32 : i32, i32
  }
  func.func @transform_1(%arg0: i32) -> (i32, i32) {
    %c0_i32 = arith.constant 0 : i32
    %c0_i32_0 = arith.constant 0 : i32
    %c0_i32_1 = arith.constant 0 : i32
    return %c0_i32, %c0_i32_0 : i32, i32
  }
  func.func @transform_2(%arg0: i32) -> (i32, i32) {
    %c0_i32 = arith.constant 0 : i32
    %c0_i32_0 = arith.constant 0 : i32
    %c0_i32_1 = arith.constant 0 : i32
    return %c0_i32, %c0_i32_0 : i32, i32
  }
  func.func @transform_3(%arg0: i32) -> (i32, i32) {
    %c0_i32 = arith.constant 0 : i32
    %c0_i32_0 = arith.constant 0 : i32
    %c0_i32_1 = arith.constant 0 : i32
    return %c0_i32, %c0_i32_0 : i32, i32
  }
  func.func @transform_4(%arg0: i32) -> (i32, i32) {
    %c0_i32 = arith.constant 0 : i32
    %c0_i32_0 = arith.constant 0 : i32
    %c0_i32_1 = arith.constant 0 : i32
    return %c0_i32, %c0_i32_0 : i32, i32
  }
  func.func @transform_5(%arg0: i32) -> (i32, i32) {
    %c0_i32 = arith.constant 0 : i32
    %c0_i32_0 = arith.constant 0 : i32
    return %arg0, %c0_i32 : i32, i32
  }
}

</mosaic_0001>

<llo_original>
// kernel: tcn_encoder_forward.1
$region0: #{tcn_encoder_forward.1}
  #allocation0 [shape = 'u32[]', space=smem, size = 0x4, offset = 0x4, fixed_abs, tag = 'smem constant byte address 0x4 - core index']
  #allocation1 [shape = 'u32[144,128]{1,0:T(1,128)}', space=vmem, size = 0x12000, scoped, tag = 'internal scratch']
  %s0 = inlined_call_operand.vmem [shape: bf16[8,64], index: 0, kind: input, shape index: {}]
  %s1 = inlined_call_operand.vmem [shape: bf16[64,48], index: 1, kind: input, shape index: {}]
  %s2 = inlined_call_operand.vmem [shape: f32[1,48], index: 2, kind: input, shape index: {}]
  %s3 = inlined_call_operand.vmem [shape: bf16[48,128], index: 3, kind: input, shape index: {}]
  %s4 = inlined_call_operand.vmem [shape: f32[1,128], index: 4, kind: input, shape index: {}]
  %s5 = inlined_call_operand.vmem [shape: f32[8,128], index: 5, kind: output, shape index: {}]
  %s6 = sld [smem:[#allocation0]]
  $region30: #{tcn_encoder_forward.1} parent=0
    _
  %s8 = ssub.s32 1, %s6
  %s9 = scalar_select 0, %s8, %s6
  // Predicated region
  $region2: #{tcn_encoder_forward.1} parent=0 // pred_check
    _
  $region3: #{tcn_encoder_forward.1} parent=0 // pred_check_branch
    %11 = sbr.rel (0) target = $region5
  $region4: #{tcn_encoder_forward.1} parent=0 // pred_region
    _
  $region5: #{tcn_encoder_forward.1} parent=0 // pred_fallthru
    _
  // Predicated region
  $region6: #{tcn_encoder_forward.1} parent=0 // pred_check
    _
  $region7: #{tcn_encoder_forward.1} parent=0 // pred_check_branch
    %13 = sbr.rel (0) target = $region9
  $region8: #{tcn_encoder_forward.1} parent=0 // pred_region
    _
  $region9: #{tcn_encoder_forward.1} parent=0 // pred_fallthru
    _
  // Predicated region
  $region10: #{tcn_encoder_forward.1} parent=0 // pred_check
    _
  $region11: #{tcn_encoder_forward.1} parent=0 // pred_check_branch
    %15 = sbr.rel (0) target = $region13
  $region12: #{tcn_encoder_forward.1} parent=0 // pred_region
    _
  $region13: #{tcn_encoder_forward.1} parent=0 // pred_fallthru
    _
  // Predicated region
  $region14: #{tcn_encoder_forward.1} parent=0 // pred_check
    _
  $region15: #{tcn_encoder_forward.1} parent=0 // pred_check_branch
    %17 = sbr.rel (0) target = $region17
  $region16: #{tcn_encoder_forward.1} parent=0 // pred_region
    _
  $region17: #{tcn_encoder_forward.1} parent=0 // pred_fallthru
    _
  // Predicated region
  $region18: #{tcn_encoder_forward.1} parent=0 // pred_check
    _
  $region19: #{tcn_encoder_forward.1} parent=0 // pred_check_branch
    %19 = sbr.rel (0) target = $region21
  $region20: #{tcn_encoder_forward.1} parent=0 // pred_region
    _
  $region21: #{tcn_encoder_forward.1} parent=0 // pred_fallthru
    _
  %v21 = vld [vmem:[%s0] sm:$0xf]
  %v22 = vld [vmem:[%s1] sm:$0xf]
  %v23 = vld [vmem:[%s1 + $0x4] sm:$0xf]
  %v24 = vld [vmem:[%s1 + $0x8] sm:$0xf]
  %v25 = vld [vmem:[%s1 + $0xc] sm:$0xf]
  %v26 = vld [vmem:[%s1 + $0x10] sm:$0xf]
  %v27 = vld [vmem:[%s1 + $0x14] sm:$0xf]
  %v28 = vld [vmem:[%s1 + $0x18] sm:$0xf]
  %v29 = vld [vmem:[%s1 + $0x1c] sm:$0xf]
  %v30 = vld [vmem:[%s2] sm:$0x1]
  %v32 = vlaneseq
  %v33 = vshrl.u32 %v32, 7
  %v34 = vsub.s32 0, %v33
  %v35 = vrot.slane %v30, %v34
  %v45 = vunpack.c.l.b16 %v22
  %v46 = vunpack.c.l.b16 %v23
  %v47 = vunpack.c.l.b16 %v24
  %v48 = vunpack.c.l.b16 %v25
  %v49 = vunpack.c.l.b16 %v26
  %v50 = vunpack.c.l.b16 %v27
  %v51 = vunpack.c.l.b16 %v28
  %v52 = vunpack.c.l.b16 %v29
  %v53 = vpack.c.b16 %v46, %v45
  %v54 = vpack.c.b16 %v48, %v47
  %v55 = vpack.c.b16 %v50, %v49
  %v56 = vpack.c.b16 %v52, %v51
  %vm61 = vcmask 523264
  %v63 = vsel %vm61, %v21, 0
  %65 = vmatprep.subr.bf16.mxu0 0
  %66 = vmatpush1.bf16.msra.mxu0 %v53
  %67 = vmatprep.subr.bf16.mxu0 0
  %68 = vmatpush1.bf16.msra.mxu0 %v54
  %69 = vmatprep.subr.bf16.mxu0 0
  %70 = vmatpush1.bf16.msra.mxu0 %v55
  %71 = vmatprep.subr.bf16.mxu0 0
  %72 = vmatpush1.bf16.msra.mxu0 %v56
  %73 = vmatprep.subr.bf16.mxu0 0
  %74 = vmatpush1.bf16.msra.mxu0 0
  %75 = vmatprep.subr.bf16.mxu0 0
  %76 = vmatpush1.bf16.msra.mxu0 0
  %77 = vmatprep.subr.bf16.mxu0 0
  %78 = vmatpush1.bf16.msra.mxu0 0
  %79 = vmatprep.subr.bf16.mxu0 0
  %80 = vmatpush1.bf16.msra.mxu0 0
  %81 = vmatprep.subr.bf16.mxu0 0
  %82 = vmatpush1.bf16.msra.mxu0 0
  %83 = vmatprep.subr.bf16.mxu0 0
  %84 = vmatpush1.bf16.msra.mxu0 0
  %85 = vmatprep.subr.bf16.mxu0 0
  %86 = vmatpush1.bf16.msra.mxu0 0
  %87 = vmatprep.subr.bf16.mxu0 0
  %88 = vmatpush1.bf16.msra.mxu0 0
  %89 = vmatprep.subr.bf16.mxu0 0
  %90 = vmatpush1.bf16.msra.mxu0 0
  %91 = vmatprep.subr.bf16.mxu0 0
  %92 = vmatpush1.bf16.msra.mxu0 0
  %93 = vmatprep.subr.bf16.mxu0 0
  %94 = vmatpush1.bf16.msra.mxu0 0
  %95 = vmatprep.subr.bf16.mxu0 0
  %96 = vmatpush1.bf16.msra.mxu0 0
  %97 = vmatprep.mubr.bf16.mxu0 0
  %98 = vmatmul.mubr.bf16.gmra.mrb[0].mxu0 %v63
  %v99 = vpop.f32.mrb[0].mxu0
  %v100 = vadd.f32 %v35, %v99
  %v101 = vpop.f32.mrb[0].mxu0
  %v102 = vpop.f32.mrb[0].mxu0
  %v103 = vpop.f32.mrb[0].mxu0
  %104 = vdwg.mxu0
  %vm105 = vcmask 392192
  %v106 = vsel %vm105, %v100, 0.0
  %107 = vadd.xlane.f32.xlu0 %v106
  %v108 = vpop.xlane.xlu0 %107
  %v109 = vrcp.pop 48.0
  %v110 = vmul.f32 %v108, %v109
  %v111 = vsub.f32 %v100, %v110
  %v112 = vmul.f32 %v111, %v111
  %v113 = vsel %vm105, %v112, 0.0
  %114 = vadd.xlane.f32.xlu0 %v113
  %v115 = vpop.xlane.xlu0 %114
  %v116 = vmul.f32 %v115, %v109
  %v117 = vadd.f32 %v116, 1e-05
  %v118 = vrsqrt.pop %v117
  %v119 = vmul.f32 %v111, %v118
  %v120 = vpack.c.bf16 %v119, %v119
  %v121 = vld [vmem:[%s3] sm:$0xf]
  %v122 = vld [vmem:[%s3 + $0x4] sm:$0xf]
  %v123 = vld [vmem:[%s3 + $0x8] sm:$0xf]
  %v124 = vld [vmem:[%s3 + $0xc] sm:$0xf]
  %v125 = vld [vmem:[%s3 + $0x10] sm:$0xf]
  %v126 = vld [vmem:[%s3 + $0x14] sm:$0xf]
  %v127 = vld [vmem:[%s4] sm:$0x1]
  %v129 = vlaneseq
  %v130 = vshrl.u32 %v129, 7
  %v131 = vsub.s32 0, %v130
  %v132 = vrot.slane %v127, %v131
  %v140 = vunpack.c.l.b16 %v121
  %v141 = vunpack.c.l.b16 %v122
  %v142 = vunpack.c.l.b16 %v123
  %v143 = vunpack.c.l.b16 %v124
  %v144 = vunpack.c.l.b16 %v125
  %v145 = vunpack.c.l.b16 %v126
  %v146 = vpack.c.b16 %v141, %v140
  %v147 = vpack.c.b16 %v143, %v142
  %v148 = vpack.c.b16 %v145, %v144
  %v153 = vsel %vm105, %v120, 0
  %155 = vmatprep.subr.bf16.mxu0 0
  %156 = vmatpush1.bf16.msra.mxu0 %v146
  %157 = vmatprep.subr.bf16.mxu0 0
  %158 = vmatpush1.bf16.msra.mxu0 %v147
  %159 = vmatprep.subr.bf16.mxu0 0
  %160 = vmatpush1.bf16.msra.mxu0 %v148
  %161 = vmatprep.subr.bf16.mxu0 0
  %162 = vmatpush1.bf16.msra.mxu0 0
  %163 = vmatprep.subr.bf16.mxu0 0
  %164 = vmatpush1.bf16.msra.mxu0 0
  %165 = vmatprep.subr.bf16.mxu0 0
  %166 = vmatpush1.bf16.msra.mxu0 0
  %167 = vmatprep.subr.bf16.mxu0 0
  %168 = vmatpush1.bf16.msra.mxu0 0
  %169 = vmatprep.subr.bf16.mxu0 0
  %170 = vmatpush1.bf16.msra.mxu0 0
  %171 = vmatprep.subr.bf16.mxu0 0
  %172 = vmatpush1.bf16.msra.mxu0 0
  %173 = vmatprep.subr.bf16.mxu0 0
  %174 = vmatpush1.bf16.msra.mxu0 0
  %175 = vmatprep.subr.bf16.mxu0 0
  %176 = vmatpush1.bf16.msra.mxu0 0
  %177 = vmatprep.subr.bf16.mxu0 0
  %178 = vmatpush1.bf16.msra.mxu0 0
  %179 = vmatprep.subr.bf16.mxu0 0
  %180 = vmatpush1.bf16.msra.mxu0 0
  %181 = vmatprep.subr.bf16.mxu0 0
  %182 = vmatpush1.bf16.msra.mxu0 0
  %183 = vmatprep.subr.bf16.mxu0 0
  %184 = vmatpush1.bf16.msra.mxu0 0
  %185 = vmatprep.subr.bf16.mxu0 0
  %186 = vmatpush1.bf16.msra.mxu0 0
  %187 = vmatprep.mubr.bf16.mxu0 0
  %188 = vmatmul.mubr.bf16.gmra.mrb[0].mxu0 %v153
  %v189 = vpop.f32.mrb[0].mxu0
  %v190 = vadd.f32 %v132, %v189
  %v191 = vpop.f32.mrb[0].mxu0
  %v192 = vpop.f32.mrb[0].mxu0
  %v193 = vpop.f32.mrb[0].mxu0
  %194 = vdwg.mxu0
  %195 = vst [vmem:[%s5] sm:$0xff] %v190
  // Predicated region
  $region22: #{tcn_encoder_forward.1} parent=0 // pred_check
    _
  $region23: #{tcn_encoder_forward.1} parent=0 // pred_check_branch
    %197 = sbr.rel (0) target = $region25
  $region24: #{tcn_encoder_forward.1} parent=0 // pred_region
    _
  $region25: #{tcn_encoder_forward.1} parent=0 // pred_fallthru
    _
  // Predicated region
  $region26: #{tcn_encoder_forward.1} parent=0 // pred_check
    _
  $region27: #{tcn_encoder_forward.1} parent=0 // pred_check_branch
    %199 = sbr.rel (0) target = $region29
  $region28: #{tcn_encoder_forward.1} parent=0 // pred_region
    _
  $region29: #{tcn_encoder_forward.1} parent=0 // pred_fallthru
    _

</llo_original>
